<compile_context>
chip_gen: v5e
topology: v5e:2x2
jax: 0.10.0
libtpu: 0.0.40
codegen_flags: <defaults>
</compile_context>

<pallas_src>
import functools

import jax
import jax.numpy as jnp
from jax.experimental import pallas as pl
from jax.experimental.pallas import tpu as pltpu


def _round_up(x, m):
    return ((x + m - 1) // m) * m


def _cdiv(a, b):
    return (a + b - 1) // b


# ----------------------------- Pallas kernel ---------------------------------
def _fused_cnn_mlp_kernel(x_ref,     # (TLh_p, D_in_p)  haloed raw-x tile (compute dtype)
                          wc_ref,    # (K, D_in_p, C_p) conv weight, tap-major
                          w1_ref,    # (C_p, H1_p)
                          w2_ref,    # (H1_p, H2_p)
                          w3_ref,    # (H2_p, O_p)
                          bias_ref,  # (4, P_max) f32: rows = conv, fc1, fc2, fc3 bias
                          out_ref,   # (TL, O_p)        compute dtype
                          *, k_taps, tl):
    negative_slope = 0.01  # torch.nn.LeakyReLU default

    def leaky(v):
        return jnp.where(v > 0, v, negative_slope * v)

    c_p = wc_ref.shape[-1]
    h1_p = w1_ref.shape[-1]
    h2_p = w2_ref.shape[-1]
    o_p = w3_ref.shape[-1]
    bias = bias_ref[...]  # (4, P_max) f32

    # --- Conv1d as K accumulated shifted matmuls on the haloed tile -----------
    # (in-kernel im2col: output row r uses halo rows r .. r+K-1).
    conv = jnp.dot(x_ref[pl.ds(0, tl), :], wc_ref[0],
                   preferred_element_type=jnp.float32)
    for k in range(1, k_taps):
        conv = conv + jnp.dot(x_ref[pl.ds(k, tl), :], wc_ref[k],
                              preferred_element_type=jnp.float32)
    h = leaky(conv + bias[0:1, :c_p])

    # --- FNN: Linear -> LeakyReLU -> Linear -> LeakyReLU -> Linear (no out act)
    h1 = leaky(jnp.dot(h.astype(w1_ref.dtype), w1_ref[...],
                       preferred_element_type=jnp.float32) + bias[1:2, :h1_p])
    h2 = leaky(jnp.dot(h1.astype(w2_ref.dtype), w2_ref[...],
                       preferred_element_type=jnp.float32) + bias[2:3, :h2_p])
    o = jnp.dot(h2.astype(w3_ref.dtype), w3_ref[...],
                preferred_element_type=jnp.float32) + bias[3:4, :o_p]
    out_ref[...] = o.astype(out_ref.dtype)


# ------------------------------ wrapper --------------------------------------
@functools.partial(jax.jit, static_argnames=("padding", "compute_dtype"))
def minimal_cnn_forward(x, params, *, padding, compute_dtype=jnp.bfloat16):
    """Forward pass matching MinimalCNN.forward.

    x      : (B, L, input_dim) float32 -- same call layout as the torch module.
    params : torch-layout parameters:
        conv_w (C, D_in, K), conv_b (C,),
        w1 (H1, C), b1 (H1,), w2 (H2, H1), b2 (H2,), w3 (O, H2), b3 (O,)
    Returns (B, L_out, O) float32, squeezed on the last axis iff O == 1.
    """
    conv_w, conv_b, w1, b1, w2, b2, w3, b3 = params
    B, L, D_in = x.shape
    C, _, K = conv_w.shape
    H1, H2, O = w1.shape[0], w2.shape[0], w3.shape[0]
    L_out = L + 2 * padding - K + 1

    # ---------------------------- tile geometry ------------------------------
    sub = 16 if compute_dtype == jnp.bfloat16 else 8   # sublane packing
    TL_MAX = 1024                                       # fat row tiles per step
    TL = min(TL_MAX, _round_up(L_out, sub))
    n_seq = _cdiv(L_out, TL)
    # Keep >= 2 grid steps when there is enough work (v7x: 2 TensorCores share
    # the "parallel" grid axis).
    if B * n_seq < 2 and L_out >= 2 * sub:
        TL = _round_up(_cdiv(L_out, 2), sub)
        n_seq = _cdiv(L_out, TL)
    TLh_p = _round_up(TL + K - 1, sub)                  # haloed tile rows

    D_in_p = _round_up(D_in, 128)
    C_p, H1_p, H2_p, O_p = (_round_up(d, 128) for d in (C, H1, H2, O))
    P_max = max(C_p, H1_p, H2_p, O_p)

    # ------------- wrapper-side layout plumbing (cheap XLA glue) -------------
    # Cast to the compute dtype FIRST so all subsequent HBM traffic is halved.
    x_c = x.astype(compute_dtype)
    L_work = (n_seq - 1) * TL + TLh_p                   # padded seq incl. halo/tail
    x_pad = jnp.pad(x_c, ((0, 0), (padding, L_work - L - padding), (0, 0)))
    # Overlapping (haloed) seq tiles: tile j covers input rows [j*TL, j*TL+TLh_p).
    idx = jnp.arange(n_seq)[:, None] * TL + jnp.arange(TLh_p)[None, :]
    x_tiles = jnp.take(x_pad, idx, axis=1)              # (B, n_seq, TLh_p, D_in)
    x_tiles = x_tiles.reshape(B * n_seq, TLh_p, D_in)
    x_tiles = jnp.pad(x_tiles, ((0, 0), (0, 0), (0, D_in_p - D_in)))

    # Conv weight (C, D_in, K) -> tap-major (K, D_in, C), lane-padded; Linears
    # -> (in, out).  Feature dims padded to 128 (NOT 256 -- kernel is HBM-bound).
    wc = jnp.transpose(conv_w, (2, 1, 0))
    wc_p = jnp.pad(wc, ((0, 0), (0, D_in_p - D_in), (0, C_p - C))).astype(compute_dtype)

    def pad2(a, r, c):
        return jnp.pad(a, ((0, r - a.shape[0]), (0, c - a.shape[1])))

    w1_p = pad2(w1.T, C_p, H1_p).astype(compute_dtype)
    w2_p = pad2(w2.T, H1_p, H2_p).astype(compute_dtype)
    w3_p = pad2(w3.T, H2_p, O_p).astype(compute_dtype)

    # Fold all four biases into one small f32 tensor (fewer input refs / DMAs).
    def padb(b):
        return jnp.pad(b, (0, P_max - b.shape[0]))
    bias_all = jnp.stack([padb(conv_b), padb(b1), padb(b2), padb(b3)]).astype(jnp.float32)

    # ------------------------ explicit VMEM budget ---------------------------
    bpe = jnp.dtype(compute_dtype).itemsize
    weight_bytes = (K * D_in_p * C_p + C_p * H1_p + H1_p * H2_p + H2_p * O_p) * bpe
    block_bytes = (2 * TLh_p * D_in_p * bpe          # x tile (double-buffered)
                   + 2 * TL * O_p * bpe              # out tile (double-buffered)
                   + 2 * weight_bytes                # grid-resident weights
                   + 2 * 4 * P_max * 4               # biases
                   + TL * (C_p + H1_p + H2_p) * 4    # f32 intermediates
                   + 2 * TL * D_in_p * bpe)          # shifted conv operand slices
    # Clamp to 64 MiB so the request is valid on v7x (64 MiB physical VMEM).
    vmem_limit = int(min(max(2 * block_bytes, 32 * 1024 * 1024), 64 * 1024 * 1024))

    kernel = functools.partial(_fused_cnn_mlp_kernel, k_taps=K, tl=TL)
    full = lambda shape: pl.BlockSpec(shape, lambda i, _s=shape: (0,) * len(_s))

    out = pl.pallas_call(
        kernel,
        out_shape=jax.ShapeDtypeStruct((B * n_seq, TL, O_p), compute_dtype),
        grid_spec=pltpu.PrefetchScalarGridSpec(
            num_scalar_prefetch=0,
            grid=(B * n_seq,),
            in_specs=[
                pl.BlockSpec((None, TLh_p, D_in_p), lambda i: (i, 0, 0)),  # haloed x tiles
                full((K, D_in_p, C_p)),     # conv weight (constant index_map)
                full((C_p, H1_p)),          # fc1
                full((H1_p, H2_p)),         # fc2
                full((H2_p, O_p)),          # fc3
                full((4, P_max)),           # folded biases (f32)
            ],
            out_specs=pl.BlockSpec((None, TL, O_p), lambda i: (i, 0, 0)),
        ),
        compiler_params=pltpu.CompilerParams(
            dimension_semantics=("parallel",),
            vmem_limit_bytes=vmem_limit,
        ),
    )(x_tiles, wc_p, w1_p, w2_p, w3_p, bias_all)

    # Slice off row / lane padding and cast back to f32 in the wrapper.
    y = out.reshape(B, n_seq * TL, O_p)[:, :L_out, :O].astype(x.dtype)
    return y[..., 0] if O == 1 else y   # torch's final .squeeze(-1)


# -------------------------- pure-JAX reference --------------------------------
def minimal_cnn_reference(x, params, *, padding):
    conv_w, conv_b, w1, b1, w2, b2, w3, b3 = params
    leaky = lambda v: jnp.where(v > 0, v, 0.01 * v)
    C, D_in, K = conv_w.shape
    B, L, _ = x.shape
    L_out = L + 2 * padding - K + 1
    x_pad = jnp.pad(x, ((0, 0), (padding, padding), (0, 0)))
    conv = sum(jnp.einsum("bld,cd->blc", x_pad[:, k:k + L_out, :], conv_w[:, :, k])
               for k in range(K)) + conv_b
    h = leaky(conv)
    h = leaky(h @ w1.T + b1)
    h = leaky(h @ w2.T + b2)
    y = h @ w3.T + b3
    return y[..., 0] if w3.shape[0] == 1 else y


# ------------------------------- main -----------------------------------------
if __name__ == "__main__":
    # Small shapes consistent with the module's forward semantics.
    B, L, D_IN = 2, 16, 32          # (batch, length, input_dim)
    C, K, PAD = 32, 7, 3            # n_channels, kernel_size, padding
    H1, H2, O = 32, 16, 8           # fnn_hidden_layers=[H1, H2], output_dim=O

    key = jax.random.PRNGKey(0)
    ks = jax.random.split(key, 9)

    x = jax.random.normal(ks[0], (B, L, D_IN), jnp.float32)

    # Parameters in *torch* layout (Conv1d weight (C, D_in, K), Linear (out, in)).
    conv_w = jax.random.normal(ks[1], (C, D_IN, K), jnp.float32) * 0.05
    conv_b = jax.random.normal(ks[2], (C,), jnp.float32) * 0.05
    w1 = jax.random.normal(ks[3], (H1, C), jnp.float32) * 0.05
    b1 = jax.random.normal(ks[4], (H1,), jnp.float32) * 0.05
    w2 = jax.random.normal(ks[5], (H2, H1), jnp.float32) * 0.05
    b2 = jax.random.normal(ks[6], (H2,), jnp.float32) * 0.05
    w3 = jax.random.normal(ks[7], (O, H2), jnp.float32) * 0.05
    b3 = jax.random.normal(ks[8], (O,), jnp.float32) * 0.05
    params = (conv_w, conv_b, w1, b1, w2, b2, w3, b3)

    ref = minimal_cnn_reference(x, params, padding=PAD)

    # Default fast path: bf16 operands, f32 accumulation (loose tolerance).
    out_bf16 = jax.block_until_ready(minimal_cnn_forward(x, params, padding=PAD))
    assert out_bf16.shape == (B, L, O), out_bf16.shape
    err_bf16 = float(jnp.max(jnp.abs(out_bf16 - ref)))
    assert err_bf16 < 3e-2, err_bf16

    # Exact f32 path through the same kernel (tight tolerance).
    out_f32 = jax.block_until_ready(
        minimal_cnn_forward(x, params, padding=PAD, compute_dtype=jnp.float32))
    assert jnp.allclose(out_f32, ref, rtol=2e-4, atol=2e-4), \
        float(jnp.max(jnp.abs(out_f32 - ref)))

    # TODO(synk): cnn_dropout_rate / fnn_dropout_rate (inference no-ops) are
    # not implemented in-kernel.
    print("KERNEL_OK")
</pallas_src>

<mosaic_0001>
module attributes {stable_mosaic.version = 11 : i64} {
  func.func @_fused_cnn_mlp_kernel(%arg0: i32, %arg1: memref<1x32x128xbf16, #tpu.memory_space<vmem>>, %arg2: memref<7x128x128xbf16, #tpu.memory_space<vmem>>, %arg3: memref<128x128xbf16, #tpu.memory_space<vmem>>, %arg4: memref<128x128xbf16, #tpu.memory_space<vmem>>, %arg5: memref<128x128xbf16, #tpu.memory_space<vmem>>, %arg6: memref<4x128xf32, #tpu.memory_space<vmem>>, %arg7: memref<1x16x128xbf16, #tpu.memory_space<vmem>>) attributes {dimension_semantics = [#tpu.dimension_semantics<parallel>], iteration_bounds = array<i64: 2>, scalar_prefetch = 0 : i64, scratch_operands = 0 : i64, tpu.core_type = #tpu.core_type<tc>, window_params = [{transform_indices = @transform_0, window_bounds = array<i64: 1, 32, 128>}, {pipeline_mode = #tpu.pipeline_mode<synchronous>, transform_indices = @transform_1, window_bounds = array<i64: 7, 128, 128>}, {pipeline_mode = #tpu.pipeline_mode<synchronous>, transform_indices = @transform_2, window_bounds = array<i64: 128, 128>}, {pipeline_mode = #tpu.pipeline_mode<synchronous>, transform_indices = @transform_3, window_bounds = array<i64: 128, 128>}, {pipeline_mode = #tpu.pipeline_mode<synchronous>, transform_indices = @transform_4, window_bounds = array<i64: 128, 128>}, {pipeline_mode = #tpu.pipeline_mode<synchronous>, transform_indices = @transform_5, window_bounds = array<i64: 4, 128>}, {transform_indices = @transform_6, window_bounds = array<i64: 1, 16, 128>}]} {
    %c0 = arith.constant 0 : index
    %c0_0 = arith.constant 0 : index
    %0 = vector.load %arg6[%c0, %c0_0] : memref<4x128xf32, #tpu.memory_space<vmem>>, vector<4x128xf32>
    %c0_1 = arith.constant 0 : index
    %c0_2 = arith.constant 0 : index
    %c0_3 = arith.constant 0 : index
    %1 = vector.load %arg1[%c0_1, %c0_2, %c0_3] : memref<1x32x128xbf16, #tpu.memory_space<vmem>>, vector<1x16x128xbf16>
    %2 = vector.shape_cast %1 : vector<1x16x128xbf16> to vector<16x128xbf16>
    %c0_4 = arith.constant 0 : index
    %c0_5 = arith.constant 0 : index
    %c0_6 = arith.constant 0 : index
    %3 = vector.load %arg2[%c0_4, %c0_5, %c0_6] : memref<7x128x128xbf16, #tpu.memory_space<vmem>>, vector<1x128x128xbf16>
    %4 = vector.shape_cast %3 : vector<1x128x128xbf16> to vector<128x128xbf16>
    %cst = arith.constant dense<0.000000e+00> : vector<16x128xf32>
    %5 = tpu.matmul %2, %4, %cst {dimension_numbers = #tpu.dot_dimension_numbers<[1], [0], [0], [1], [0, 0, 1, 1], [], []>} : vector<16x128xbf16>, vector<128x128xbf16>, vector<16x128xf32> -> vector<16x128xf32>
    %c0_7 = arith.constant 0 : index
    %c1 = arith.constant 1 : index
    %c0_8 = arith.constant 0 : index
    %6 = vector.load %arg1[%c0_7, %c1, %c0_8] : memref<1x32x128xbf16, #tpu.memory_space<vmem>>, vector<1x16x128xbf16>
    %7 = vector.shape_cast %6 : vector<1x16x128xbf16> to vector<16x128xbf16>
    %c1_9 = arith.constant 1 : index
    %c0_10 = arith.constant 0 : index
    %c0_11 = arith.constant 0 : index
    %8 = vector.load %arg2[%c1_9, %c0_10, %c0_11] : memref<7x128x128xbf16, #tpu.memory_space<vmem>>, vector<1x128x128xbf16>
    %9 = vector.shape_cast %8 : vector<1x128x128xbf16> to vector<128x128xbf16>
    %cst_12 = arith.constant dense<0.000000e+00> : vector<16x128xf32>
    %10 = tpu.matmul %7, %9, %cst_12 {dimension_numbers = #tpu.dot_dimension_numbers<[1], [0], [0], [1], [0, 0, 1, 1], [], []>} : vector<16x128xbf16>, vector<128x128xbf16>, vector<16x128xf32> -> vector<16x128xf32>
    %11 = arith.addf %5, %10 : vector<16x128xf32>
    %c0_13 = arith.constant 0 : index
    %c2 = arith.constant 2 : index
    %c0_14 = arith.constant 0 : index
    %12 = vector.load %arg1[%c0_13, %c2, %c0_14] : memref<1x32x128xbf16, #tpu.memory_space<vmem>>, vector<1x16x128xbf16>
    %13 = vector.shape_cast %12 : vector<1x16x128xbf16> to vector<16x128xbf16>
    %c2_15 = arith.constant 2 : index
    %c0_16 = arith.constant 0 : index
    %c0_17 = arith.constant 0 : index
    %14 = vector.load %arg2[%c2_15, %c0_16, %c0_17] : memref<7x128x128xbf16, #tpu.memory_space<vmem>>, vector<1x128x128xbf16>
    %15 = vector.shape_cast %14 : vector<1x128x128xbf16> to vector<128x128xbf16>
    %cst_18 = arith.constant dense<0.000000e+00> : vector<16x128xf32>
    %16 = tpu.matmul %13, %15, %cst_18 {dimension_numbers = #tpu.dot_dimension_numbers<[1], [0], [0], [1], [0, 0, 1, 1], [], []>} : vector<16x128xbf16>, vector<128x128xbf16>, vector<16x128xf32> -> vector<16x128xf32>
    %17 = arith.addf %11, %16 : vector<16x128xf32>
    %c0_19 = arith.constant 0 : index
    %c3 = arith.constant 3 : index
    %c0_20 = arith.constant 0 : index
    %18 = vector.load %arg1[%c0_19, %c3, %c0_20] : memref<1x32x128xbf16, #tpu.memory_space<vmem>>, vector<1x16x128xbf16>
    %19 = vector.shape_cast %18 : vector<1x16x128xbf16> to vector<16x128xbf16>
    %c3_21 = arith.constant 3 : index
    %c0_22 = arith.constant 0 : index
    %c0_23 = arith.constant 0 : index
    %20 = vector.load %arg2[%c3_21, %c0_22, %c0_23] : memref<7x128x128xbf16, #tpu.memory_space<vmem>>, vector<1x128x128xbf16>
    %21 = vector.shape_cast %20 : vector<1x128x128xbf16> to vector<128x128xbf16>
    %cst_24 = arith.constant dense<0.000000e+00> : vector<16x128xf32>
    %22 = tpu.matmul %19, %21, %cst_24 {dimension_numbers = #tpu.dot_dimension_numbers<[1], [0], [0], [1], [0, 0, 1, 1], [], []>} : vector<16x128xbf16>, vector<128x128xbf16>, vector<16x128xf32> -> vector<16x128xf32>
    %23 = arith.addf %17, %22 : vector<16x128xf32>
    %c0_25 = arith.constant 0 : index
    %c4 = arith.constant 4 : index
    %c0_26 = arith.constant 0 : index
    %24 = vector.load %arg1[%c0_25, %c4, %c0_26] : memref<1x32x128xbf16, #tpu.memory_space<vmem>>, vector<1x16x128xbf16>
    %25 = vector.shape_cast %24 : vector<1x16x128xbf16> to vector<16x128xbf16>
    %c4_27 = arith.constant 4 : index
    %c0_28 = arith.constant 0 : index
    %c0_29 = arith.constant 0 : index
    %26 = vector.load %arg2[%c4_27, %c0_28, %c0_29] : memref<7x128x128xbf16, #tpu.memory_space<vmem>>, vector<1x128x128xbf16>
    %27 = vector.shape_cast %26 : vector<1x128x128xbf16> to vector<128x128xbf16>
    %cst_30 = arith.constant dense<0.000000e+00> : vector<16x128xf32>
    %28 = tpu.matmul %25, %27, %cst_30 {dimension_numbers = #tpu.dot_dimension_numbers<[1], [0], [0], [1], [0, 0, 1, 1], [], []>} : vector<16x128xbf16>, vector<128x128xbf16>, vector<16x128xf32> -> vector<16x128xf32>
    %29 = arith.addf %23, %28 : vector<16x128xf32>
    %c0_31 = arith.constant 0 : index
    %c5 = arith.constant 5 : index
    %c0_32 = arith.constant 0 : index
    %30 = vector.load %arg1[%c0_31, %c5, %c0_32] : memref<1x32x128xbf16, #tpu.memory_space<vmem>>, vector<1x16x128xbf16>
    %31 = vector.shape_cast %30 : vector<1x16x128xbf16> to vector<16x128xbf16>
    %c5_33 = arith.constant 5 : index
    %c0_34 = arith.constant 0 : index
    %c0_35 = arith.constant 0 : index
    %32 = vector.load %arg2[%c5_33, %c0_34, %c0_35] : memref<7x128x128xbf16, #tpu.memory_space<vmem>>, vector<1x128x128xbf16>
    %33 = vector.shape_cast %32 : vector<1x128x128xbf16> to vector<128x128xbf16>
    %cst_36 = arith.constant dense<0.000000e+00> : vector<16x128xf32>
    %34 = tpu.matmul %31, %33, %cst_36 {dimension_numbers = #tpu.dot_dimension_numbers<[1], [0], [0], [1], [0, 0, 1, 1], [], []>} : vector<16x128xbf16>, vector<128x128xbf16>, vector<16x128xf32> -> vector<16x128xf32>
    %35 = arith.addf %29, %34 : vector<16x128xf32>
    %c0_37 = arith.constant 0 : index
    %c6 = arith.constant 6 : index
    %c0_38 = arith.constant 0 : index
    %36 = vector.load %arg1[%c0_37, %c6, %c0_38] : memref<1x32x128xbf16, #tpu.memory_space<vmem>>, vector<1x16x128xbf16>
    %37 = vector.shape_cast %36 : vector<1x16x128xbf16> to vector<16x128xbf16>
    %c6_39 = arith.constant 6 : index
    %c0_40 = arith.constant 0 : index
    %c0_41 = arith.constant 0 : index
    %38 = vector.load %arg2[%c6_39, %c0_40, %c0_41] : memref<7x128x128xbf16, #tpu.memory_space<vmem>>, vector<1x128x128xbf16>
    %39 = vector.shape_cast %38 : vector<1x128x128xbf16> to vector<128x128xbf16>
    %cst_42 = arith.constant dense<0.000000e+00> : vector<16x128xf32>
    %40 = tpu.matmul %37, %39, %cst_42 {dimension_numbers = #tpu.dot_dimension_numbers<[1], [0], [0], [1], [0, 0, 1, 1], [], []>} : vector<16x128xbf16>, vector<128x128xbf16>, vector<16x128xf32> -> vector<16x128xf32>
    %41 = arith.addf %35, %40 : vector<16x128xf32>
    %42 = vector.extract_strided_slice %0 {offsets = [0, 0], sizes = [1, 128], strides = [1, 1]} : vector<4x128xf32> to vector<1x128xf32>
    %43 = vector.broadcast %42 : vector<1x128xf32> to vector<16x128xf32>
    %44 = arith.addf %41, %43 : vector<16x128xf32>
    %cst_43 = arith.constant 0.000000e+00 : f32
    %45 = vector.broadcast %cst_43 : f32 to vector<16x128xf32>
    %46 = arith.cmpf ogt, %44, %45 : vector<16x128xf32>
    %cst_44 = arith.constant 0.00999999977 : f32
    %47 = vector.broadcast %cst_44 : f32 to vector<16x128xf32>
    %48 = arith.mulf %47, %44 : vector<16x128xf32>
    %49 = arith.select %46, %44, %48 : vector<16x128xi1>, vector<16x128xf32>
    %50 = arith.truncf %49 : vector<16x128xf32> to vector<16x128xbf16>
    %c0_45 = arith.constant 0 : index
    %c0_46 = arith.constant 0 : index
    %51 = vector.load %arg3[%c0_45, %c0_46] : memref<128x128xbf16, #tpu.memory_space<vmem>>, vector<128x128xbf16>
    %cst_47 = arith.constant dense<0.000000e+00> : vector<16x128xf32>
    %52 = tpu.matmul %50, %51, %cst_47 {dimension_numbers = #tpu.dot_dimension_numbers<[1], [0], [0], [1], [0, 0, 1, 1], [], []>} : vector<16x128xbf16>, vector<128x128xbf16>, vector<16x128xf32> -> vector<16x128xf32>
    %53 = vector.extract_strided_slice %0 {offsets = [1, 0], sizes = [1, 128], strides = [1, 1]} : vector<4x128xf32> to vector<1x128xf32>
    %54 = vector.broadcast %53 : vector<1x128xf32> to vector<16x128xf32>
    %55 = arith.addf %52, %54 : vector<16x128xf32>
    %cst_48 = arith.constant 0.000000e+00 : f32
    %56 = vector.broadcast %cst_48 : f32 to vector<16x128xf32>
    %57 = arith.cmpf ogt, %55, %56 : vector<16x128xf32>
    %cst_49 = arith.constant 0.00999999977 : f32
    %58 = vector.broadcast %cst_49 : f32 to vector<16x128xf32>
    %59 = arith.mulf %58, %55 : vector<16x128xf32>
    %60 = arith.select %57, %55, %59 : vector<16x128xi1>, vector<16x128xf32>
    %61 = arith.truncf %60 : vector<16x128xf32> to vector<16x128xbf16>
    %c0_50 = arith.constant 0 : index
    %c0_51 = arith.constant 0 : index
    %62 = vector.load %arg4[%c0_50, %c0_51] : memref<128x128xbf16, #tpu.memory_space<vmem>>, vector<128x128xbf16>
    %cst_52 = arith.constant dense<0.000000e+00> : vector<16x128xf32>
    %63 = tpu.matmul %61, %62, %cst_52 {dimension_numbers = #tpu.dot_dimension_numbers<[1], [0], [0], [1], [0, 0, 1, 1], [], []>} : vector<16x128xbf16>, vector<128x128xbf16>, vector<16x128xf32> -> vector<16x128xf32>
    %64 = vector.extract_strided_slice %0 {offsets = [2, 0], sizes = [1, 128], strides = [1, 1]} : vector<4x128xf32> to vector<1x128xf32>
    %65 = vector.broadcast %64 : vector<1x128xf32> to vector<16x128xf32>
    %66 = arith.addf %63, %65 : vector<16x128xf32>
    %cst_53 = arith.constant 0.000000e+00 : f32
    %67 = vector.broadcast %cst_53 : f32 to vector<16x128xf32>
    %68 = arith.cmpf ogt, %66, %67 : vector<16x128xf32>
    %cst_54 = arith.constant 0.00999999977 : f32
    %69 = vector.broadcast %cst_54 : f32 to vector<16x128xf32>
    %70 = arith.mulf %69, %66 : vector<16x128xf32>
    %71 = arith.select %68, %66, %70 : vector<16x128xi1>, vector<16x128xf32>
    %72 = arith.truncf %71 : vector<16x128xf32> to vector<16x128xbf16>
    %c0_55 = arith.constant 0 : index
    %c0_56 = arith.constant 0 : index
    %73 = vector.load %arg5[%c0_55, %c0_56] : memref<128x128xbf16, #tpu.memory_space<vmem>>, vector<128x128xbf16>
    %cst_57 = arith.constant dense<0.000000e+00> : vector<16x128xf32>
    %74 = tpu.matmul %72, %73, %cst_57 {dimension_numbers = #tpu.dot_dimension_numbers<[1], [0], [0], [1], [0, 0, 1, 1], [], []>} : vector<16x128xbf16>, vector<128x128xbf16>, vector<16x128xf32> -> vector<16x128xf32>
    %75 = vector.extract_strided_slice %0 {offsets = [3, 0], sizes = [1, 128], strides = [1, 1]} : vector<4x128xf32> to vector<1x128xf32>
    %76 = vector.broadcast %75 : vector<1x128xf32> to vector<16x128xf32>
    %77 = arith.addf %74, %76 : vector<16x128xf32>
    %78 = arith.truncf %77 : vector<16x128xf32> to vector<16x128xbf16>
    %c0_58 = arith.constant 0 : index
    %c0_59 = arith.constant 0 : index
    %c0_60 = arith.constant 0 : index
    %79 = vector.load %arg7[%c0_58, %c0_59, %c0_60] : memref<1x16x128xbf16, #tpu.memory_space<vmem>>, vector<1x16x128xbf16>
    %80 = vector.shape_cast %79 : vector<1x16x128xbf16> to vector<16x128xbf16>
    %81 = vector.shape_cast %78 : vector<16x128xbf16> to vector<1x16x128xbf16>
    tpu.vector_store %arg7[%c0_58, %c0_59, %c0_60], %81 {strides = array<i32>} : memref<1x16x128xbf16, #tpu.memory_space<vmem>>, vector<1x16x128xbf16>,
    return
  }
  func.func @transform_0(%arg0: i32) -> (i32, i32, i32) {
    %c0_i32 = arith.constant 0 : i32
    %c0_i32_0 = arith.constant 0 : i32
    %c0_i32_1 = arith.constant 0 : i32
    return %arg0, %c0_i32, %c0_i32_0 : i32, i32, i32
  }
  func.func @transform_1(%arg0: i32) -> (i32, i32, i32) {
    %c0_i32 = arith.constant 0 : i32
    %c0_i32_0 = arith.constant 0 : i32
    %c0_i32_1 = arith.constant 0 : i32
    %c0_i32_2 = arith.constant 0 : i32
    return %c0_i32, %c0_i32_0, %c0_i32_1 : i32, i32, i32
  }
  func.func @transform_2(%arg0: i32) -> (i32, i32) {
    %c0_i32 = arith.constant 0 : i32
    %c0_i32_0 = arith.constant 0 : i32
    %c0_i32_1 = arith.constant 0 : i32
    return %c0_i32, %c0_i32_0 : i32, i32
  }
  func.func @transform_3(%arg0: i32) -> (i32, i32) {
    %c0_i32 = arith.constant 0 : i32
    %c0_i32_0 = arith.constant 0 : i32
    %c0_i32_1 = arith.constant 0 : i32
    return %c0_i32, %c0_i32_0 : i32, i32
  }
  func.func @transform_4(%arg0: i32) -> (i32, i32) {
    %c0_i32 = arith.constant 0 : i32
    %c0_i32_0 = arith.constant 0 : i32
    %c0_i32_1 = arith.constant 0 : i32
    return %c0_i32, %c0_i32_0 : i32, i32
  }
  func.func @transform_5(%arg0: i32) -> (i32, i32) {
    %c0_i32 = arith.constant 0 : i32
    %c0_i32_0 = arith.constant 0 : i32
    %c0_i32_1 = arith.constant 0 : i32
    return %c0_i32, %c0_i32_0 : i32, i32
  }
  func.func @transform_6(%arg0: i32) -> (i32, i32, i32) {
    %c0_i32 = arith.constant 0 : i32
    %c0_i32_0 = arith.constant 0 : i32
    %c0_i32_1 = arith.constant 0 : i32
    return %arg0, %c0_i32, %c0_i32_0 : i32, i32, i32
  }
}

</mosaic_0001>

<llo_original>
// kernel: minimal_cnn_forward.1
$region0: #{minimal_cnn_forward.1}
  #allocation0 [shape = 'u32[]', space=smem, size = 0x4, offset = 0x4, fixed_abs, tag = 'smem constant byte address 0x4 - core index']
  #allocation1 [shape = 'u32[72,128]{1,0:T(1,128)}', space=vmem, size = 0x9000, scoped, tag = 'internal scratch']
  %s0 = inlined_call_operand.vmem [shape: bf16[2,32,128], index: 0, kind: input, shape index: {}]
  %s1 = inlined_call_operand.vmem [shape: bf16[7,128,128], index: 1, kind: input, shape index: {}]
  %s2 = inlined_call_operand.vmem [shape: bf16[128,128], index: 2, kind: input, shape index: {}]
  %s3 = inlined_call_operand.vmem [shape: bf16[128,128], index: 3, kind: input, shape index: {}]
  %s4 = inlined_call_operand.vmem [shape: bf16[128,128], index: 4, kind: input, shape index: {}]
  %s5 = inlined_call_operand.vmem [shape: f32[4,128], index: 5, kind: input, shape index: {}]
  %s6 = inlined_call_operand.vmem [shape: bf16[2,16,128], index: 6, kind: output, shape index: {}]
  %s7 = sld [smem:[#allocation0]]
  $region57: #{minimal_cnn_forward.1} parent=0
    _
  %s9 = ssub.s32 1, %s7
  %s10 = scalar_select 0, %s9, %s7
  loop: start=0, step=1, limit=4
  $region2: #{minimal_cnn_forward.1} parent=0 // loop_pre_header
    _
  $region3: #{minimal_cnn_forward.1} parent=0 // loop_header
    %s12 = sphi 0, %s16
    %p13 = scmp.ge.s32.totalorder %s12, 4
    %s22 = sphi 0, %s24
    %s25 = sphi 0, %s22
    %s26 = sphi 0, %s25
    %s42 = sphi 0, %s26
    %s46 = sphi 0, %s46
    %s48 = sphi 0, %s46
    %s49 = sphi 0, %s48
    %s63 = sphi 0, %s49
    %s67 = sphi 0, %s67
    %s69 = sphi 0, %s67
    %s70 = sphi 0, %s69
    %s84 = sphi 0, %s70
    %s88 = sphi 0, %s88
    %s90 = sphi 0, %s88
    %s91 = sphi 0, %s90
    %s105 = sphi 0, %s91
    %s109 = sphi 0, %s109
    %s111 = sphi 0, %s109
    %s112 = sphi 0, %s111
    %s126 = sphi 0, %s112
    %s130 = sphi 0, %s130
    %s132 = sphi 0, %s130
    %s133 = sphi 0, %s132
    %s147 = sphi 0, %s133
    %s153 = sphi 0, %s155
    %s156 = sphi 0, %s153
    %s157 = sphi 0, %s156
    %s173 = sphi 0, %s157
  $region4: #{minimal_cnn_forward.1} parent=0 // loop_header_branch
    %15 = sbr.rel (%p13) target = $region8
  $region5: #{minimal_cnn_forward.1} parent=0 // loop_body
    %s17 = ssub.s32 %s12, 1
    %s18 = ssub.s32 %s12, 2
    %s19 = sadd.s32 %s12, 1
    %s20 = ssub.s32 %s12, %s19
    %p21 = scmp.eq.s32.totalorder %s20, 0
    %s23 = sadd.s32 %s22, 1
    %s24 = scalar_select %p21, %s22, %s23
    %p27 = pneg %p21
    %p28 = scmp.eq.s32.totalorder %s12, 1
    %p29 = por %p27, %p28
    %p30 = scmp.ne.s32.totalorder %s22, %s25
    %p31 = scmp.eq.s32.totalorder %s12, 0
    %p32 = por %p30, %p31
    %p33 = scmp.ne.s32.totalorder %s22, %s25
    %p34 = scmp.eq.s32.totalorder %s17, 1
    %p35 = por %p33, %p34
    %p36 = scmp.ne.s32.totalorder %s25, %s26
    %p37 = scmp.eq.s32.totalorder %s17, 0
    %p38 = por %p36, %p37
    %p39 = scmp.ne.s32.totalorder %s25, %s26
    %p40 = scmp.eq.s32.totalorder %s18, 1
    %p41 = por %p39, %p40
    %p43 = scmp.ne.s32.totalorder %s26, %s42
    %p44 = scmp.eq.s32.totalorder %s18, 0
    %p45 = por %p43, %p44
    %s47 = sadd.s32 %s46, 1
    %p50 = scmp.eq.s32.totalorder %s12, 1
    %p51 = scmp.ne.s32.totalorder %s46, %s48
    %p52 = scmp.eq.s32.totalorder %s12, 0
    %p53 = por %p51, %p52
    %p54 = scmp.ne.s32.totalorder %s46, %s48
    %p55 = scmp.eq.s32.totalorder %s17, 1
    %p56 = por %p54, %p55
    %p57 = scmp.ne.s32.totalorder %s48, %s49
    %p58 = scmp.eq.s32.totalorder %s17, 0
    %p59 = por %p57, %p58
    %p60 = scmp.ne.s32.totalorder %s48, %s49
    %p61 = scmp.eq.s32.totalorder %s18, 1
    %p62 = por %p60, %p61
    %p64 = scmp.ne.s32.totalorder %s49, %s63
    %p65 = scmp.eq.s32.totalorder %s18, 0
    %p66 = por %p64, %p65
    %s68 = sadd.s32 %s67, 1
    %p71 = scmp.eq.s32.totalorder %s12, 1
    %p72 = scmp.ne.s32.totalorder %s67, %s69
    %p73 = scmp.eq.s32.totalorder %s12, 0
    %p74 = por %p72, %p73
    %p75 = scmp.ne.s32.totalorder %s67, %s69
    %p76 = scmp.eq.s32.totalorder %s17, 1
    %p77 = por %p75, %p76
    %p78 = scmp.ne.s32.totalorder %s69, %s70
    %p79 = scmp.eq.s32.totalorder %s17, 0
    %p80 = por %p78, %p79
    %p81 = scmp.ne.s32.totalorder %s69, %s70
    %p82 = scmp.eq.s32.totalorder %s18, 1
    %p83 = por %p81, %p82
    %p85 = scmp.ne.s32.totalorder %s70, %s84
    %p86 = scmp.eq.s32.totalorder %s18, 0
    %p87 = por %p85, %p86
    %s89 = sadd.s32 %s88, 1
    %p92 = scmp.eq.s32.totalorder %s12, 1
    %p93 = scmp.ne.s32.totalorder %s88, %s90
    %p94 = scmp.eq.s32.totalorder %s12, 0
    %p95 = por %p93, %p94
    %p96 = scmp.ne.s32.totalorder %s88, %s90
    %p97 = scmp.eq.s32.totalorder %s17, 1
    %p98 = por %p96, %p97
    %p99 = scmp.ne.s32.totalorder %s90, %s91
    %p100 = scmp.eq.s32.totalorder %s17, 0
    %p101 = por %p99, %p100
    %p102 = scmp.ne.s32.totalorder %s90, %s91
    %p103 = scmp.eq.s32.totalorder %s18, 1
    %p104 = por %p102, %p103
    %p106 = scmp.ne.s32.totalorder %s91, %s105
    %p107 = scmp.eq.s32.totalorder %s18, 0
    %p108 = por %p106, %p107
    %s110 = sadd.s32 %s109, 1
    %p113 = scmp.eq.s32.totalorder %s12, 1
    %p114 = scmp.ne.s32.totalorder %s109, %s111
    %p115 = scmp.eq.s32.totalorder %s12, 0
    %p116 = por %p114, %p115
    %p117 = scmp.ne.s32.totalorder %s109, %s111
    %p118 = scmp.eq.s32.totalorder %s17, 1
    %p119 = por %p117, %p118
    %p120 = scmp.ne.s32.totalorder %s111, %s112
    %p121 = scmp.eq.s32.totalorder %s17, 0
    %p122 = por %p120, %p121
    %p123 = scmp.ne.s32.totalorder %s111, %s112
    %p124 = scmp.eq.s32.totalorder %s18, 1
    %p125 = por %p123, %p124
    %p127 = scmp.ne.s32.totalorder %s112, %s126
    %p128 = scmp.eq.s32.totalorder %s18, 0
    %p129 = por %p127, %p128
    %s131 = sadd.s32 %s130, 1
    %p134 = scmp.eq.s32.totalorder %s12, 1
    %p135 = scmp.ne.s32.totalorder %s130, %s132
    %p136 = scmp.eq.s32.totalorder %s12, 0
    %p137 = por %p135, %p136
    %p138 = scmp.ne.s32.totalorder %s130, %s132
    %p139 = scmp.eq.s32.totalorder %s17, 1
    %p140 = por %p138, %p139
    %p141 = scmp.ne.s32.totalorder %s132, %s133
    %p142 = scmp.eq.s32.totalorder %s17, 0
    %p143 = por %p141, %p142
    %p144 = scmp.ne.s32.totalorder %s132, %s133
    %p145 = scmp.eq.s32.totalorder %s18, 1
    %p146 = por %p144, %p145
    %p148 = scmp.ne.s32.totalorder %s133, %s147
    %p149 = scmp.eq.s32.totalorder %s18, 0
    %p150 = por %p148, %p149
    %s151 = ssub.s32 %s12, %s19
    %p152 = scmp.eq.s32.totalorder %s151, 0
    %s154 = sadd.s32 %s153, 1
    %s155 = scalar_select %p152, %s153, %s154
    %p158 = pneg %p152
    %p159 = scmp.eq.s32.totalorder %s12, 1
    %p160 = por %p158, %p159
    %p161 = scmp.ne.s32.totalorder %s153, %s156
    %p162 = scmp.eq.s32.totalorder %s12, 0
    %p163 = por %p161, %p162
    %p164 = scmp.ne.s32.totalorder %s153, %s156
    %p165 = scmp.eq.s32.totalorder %s17, 1
    %p166 = por %p164, %p165
    %p167 = scmp.ne.s32.totalorder %s156, %s157
    %p168 = scmp.eq.s32.totalorder %s17, 0
    %p169 = por %p167, %p168
    %p170 = scmp.ne.s32.totalorder %s156, %s157
    %p171 = scmp.eq.s32.totalorder %s18, 1
    %p172 = por %p170, %p171
    %p174 = scmp.ne.s32.totalorder %s157, %s173
    %p175 = scmp.eq.s32.totalorder %s18, 0
    %p176 = por %p174, %p175
    %p177 = scmp.le.s32.totalorder 1, %s12
    %p178 = scmp.lt.s32.totalorder %s12, 3
    %p179 = pnand %p177, %p178
    %p180 = pneg %p179
    // Predicated region
    $region9: #{minimal_cnn_forward.1} parent=5 // pred_check
      _
    $region10: #{minimal_cnn_forward.1} parent=5 // pred_check_branch
      %182 = sbr.rel (%p179) target = $region12
    $region11: #{minimal_cnn_forward.1} parent=5 // pred_region
      %s183 = ssub.s32 %s12, 1
      // Predicated region
      $region13: #{minimal_cnn_forward.1} parent=11 // pred_check
        %p184 = pneg %p59
      $region14: #{minimal_cnn_forward.1} parent=11 // pred_check_branch
        %186 = sbr.rel (%p184) target = $region16
      $region15: #{minimal_cnn_forward.1} parent=11 // pred_region
        _
      $region16: #{minimal_cnn_forward.1} parent=11 // pred_fallthru
        _
      // Predicated region
      $region17: #{minimal_cnn_forward.1} parent=11 // pred_check
        %p187 = pneg %p80
      $region18: #{minimal_cnn_forward.1} parent=11 // pred_check_branch
        %189 = sbr.rel (%p187) target = $region20
      $region19: #{minimal_cnn_forward.1} parent=11 // pred_region
        _
      $region20: #{minimal_cnn_forward.1} parent=11 // pred_fallthru
        _
      // Predicated region
      $region21: #{minimal_cnn_forward.1} parent=11 // pred_check
        %p190 = pneg %p101
      $region22: #{minimal_cnn_forward.1} parent=11 // pred_check_branch
        %192 = sbr.rel (%p190) target = $region24
      $region23: #{minimal_cnn_forward.1} parent=11 // pred_region
        _
      $region24: #{minimal_cnn_forward.1} parent=11 // pred_fallthru
        _
      // Predicated region
      $region25: #{minimal_cnn_forward.1} parent=11 // pred_check
        %p193 = pneg %p122
      $region26: #{minimal_cnn_forward.1} parent=11 // pred_check_branch
        %195 = sbr.rel (%p193) target = $region28
      $region27: #{minimal_cnn_forward.1} parent=11 // pred_region
        _
      $region28: #{minimal_cnn_forward.1} parent=11 // pred_fallthru
        _
      // Predicated region
      $region29: #{minimal_cnn_forward.1} parent=11 // pred_check
        %p196 = pneg %p143
      $region30: #{minimal_cnn_forward.1} parent=11 // pred_check_branch
        %198 = sbr.rel (%p196) target = $region32
      $region31: #{minimal_cnn_forward.1} parent=11 // pred_region
        _
      $region32: #{minimal_cnn_forward.1} parent=11 // pred_fallthru
        _
    $region12: #{minimal_cnn_forward.1} parent=5 // pred_fallthru
      _
    %p199 = scmp.lt.s32.totalorder %s12, 2
    // Predicated region
    $region33: #{minimal_cnn_forward.1} parent=5 // pred_check
      %p200 = pneg %p199
    $region34: #{minimal_cnn_forward.1} parent=5 // pred_check_branch
      %202 = sbr.rel (%p200) target = $region36
    $region35: #{minimal_cnn_forward.1} parent=5 // pred_region
      // Predicated region
      $region37: #{minimal_cnn_forward.1} parent=35 // pred_check
        %p203 = pneg %p32
      $region38: #{minimal_cnn_forward.1} parent=35 // pred_check_branch
        %205 = sbr.rel (%p203) target = $region40
      $region39: #{minimal_cnn_forward.1} parent=35 // pred_region
        %p206 = scmp.lt.s32.totalorder %s12, 1
        %s207 = scalar_select %p206, %s12, 1
        %s208 = smul.addr %s207, 4
        %s209 = smul.addr %s208, 4
        %s210 = scalar_lea.vmem %s0, %s209
      $region40: #{minimal_cnn_forward.1} parent=35 // pred_fallthru
        _
    $region36: #{minimal_cnn_forward.1} parent=5 // pred_fallthru
      _
    %p211 = scmp.le.s32.totalorder 1, %s12
    %p212 = scmp.lt.s32.totalorder %s12, 3
    %p213 = pnand %p211, %p212
    %p214 = pneg %p213
    // Predicated region
    $region41: #{minimal_cnn_forward.1} parent=5 // pred_check
      _
    $region42: #{minimal_cnn_forward.1} parent=5 // pred_check_branch
      %216 = sbr.rel (%p213) target = $region44
    $region43: #{minimal_cnn_forward.1} parent=5 // pred_region
      %s217 = ssub.s32 %s12, 1
      %p218 = scmp.lt.s32.totalorder %s17, 1
      %s219 = scalar_select %p218, %s17, 1
      %s220 = smul.addr %s219, 4
      %s221 = smul.addr %s220, 4
      %s222 = scalar_lea.vmem %s0, %s221
      %p223 = pneg %p38
      %p224 = pneg %p35
      %p225 = pneg %p59
      %p226 = pneg %p56
      %p227 = pneg %p80
      %p228 = pneg %p77
      %p229 = pneg %p101
      %p230 = pneg %p98
      %p231 = pneg %p122
      %p232 = pneg %p119
      %p233 = pneg %p143
      %p234 = pneg %p140
      %p235 = pneg %p169
      %p236 = pneg %p166
      %p237 = scmp.lt.s32.totalorder %s17, 1
      %s238 = scalar_select %p237, %s17, 1
      %s239 = smul.addr %s238, 2
      %s240 = smul.addr %s239, 4
      %s241 = scalar_lea.vmem %s6, %s240
      %p242 = scmp.lt.s32.totalorder %s17, 1
      %s243 = scalar_select %p242, %s17, 1
      %s244 = smul.addr %s243, 4
      %s245 = smul.addr %s244, 4
      %s246 = scalar_lea.vmem %s0, %s245
      %p247 = scmp.lt.s32.totalorder %s17, 1
      %s248 = scalar_select %p247, %s17, 1
      %s249 = smul.addr %s248, 2
      %s250 = smul.addr %s249, 4
      %s251 = scalar_lea.vmem %s6, %s250
      %v252 = vld [vmem:[%s5] sm:$0xf]
      %v253 = vld [vmem:[%s246] sm:$0xf]
      %v254 = vld [vmem:[%s246 + $0x4] sm:$0xf]
      %v255 = vld [vmem:[%s1] sm:$0xf]
      %v256 = vld [vmem:[%s1 + $0x4] sm:$0xf]
      %v257 = vld [vmem:[%s1 + $0x8] sm:$0xf]
      %v258 = vld [vmem:[%s1 + $0xc] sm:$0xf]
      %v259 = vld [vmem:[%s1 + $0x10] sm:$0xf]
      %v260 = vld [vmem:[%s1 + $0x14] sm:$0xf]
      %v261 = vld [vmem:[%s1 + $0x18] sm:$0xf]
      %v262 = vld [vmem:[%s1 + $0x1c] sm:$0xf]
      %v263 = vld [vmem:[%s1 + $0x20] sm:$0xf]
      %v264 = vld [vmem:[%s1 + $0x24] sm:$0xf]
      %v265 = vld [vmem:[%s1 + $0x28] sm:$0xf]
      %v266 = vld [vmem:[%s1 + $0x2c] sm:$0xf]
      %v267 = vld [vmem:[%s1 + $0x30] sm:$0xf]
      %v268 = vld [vmem:[%s1 + $0x34] sm:$0xf]
      %v269 = vld [vmem:[%s1 + $0x38] sm:$0xf]
      %v270 = vld [vmem:[%s1 + $0x3c] sm:$0xf]
      %v271 = vld [vmem:[%s246 + $0x8] sm:$0x1]
      %s272 = scalar_lea.vmem %s1, 64
      %v273 = vld [vmem:[%s272] sm:$0xf]
      %v274 = vld [vmem:[%s272 + $0x4] sm:$0xf]
      %v275 = vld [vmem:[%s272 + $0x8] sm:$0xf]
      %v276 = vld [vmem:[%s272 + $0xc] sm:$0xf]
      %v277 = vld [vmem:[%s272 + $0x10] sm:$0xf]
      %v278 = vld [vmem:[%s272 + $0x14] sm:$0xf]
      %v279 = vld [vmem:[%s272 + $0x18] sm:$0xf]
      %v280 = vld [vmem:[%s272 + $0x1c] sm:$0xf]
      %v281 = vld [vmem:[%s272 + $0x20] sm:$0xf]
      %v282 = vld [vmem:[%s272 + $0x24] sm:$0xf]
      %v283 = vld [vmem:[%s272 + $0x28] sm:$0xf]
      %v284 = vld [vmem:[%s272 + $0x2c] sm:$0xf]
      %v285 = vld [vmem:[%s272 + $0x30] sm:$0xf]
      %v286 = vld [vmem:[%s272 + $0x34] sm:$0xf]
      %v287 = vld [vmem:[%s272 + $0x38] sm:$0xf]
      %v288 = vld [vmem:[%s272 + $0x3c] sm:$0xf]
      %v292 = vunpack.c.l.b16 %v253
      %v293 = vunpack.c.l.b16 %v254
      %v294 = vunpack.c.l.b16 %v271
      %v295 = vpack.c.b16 %v293, %v292
      %v296 = vpack.c.b16 %v294, %v294
      %vm297 = vsmask.f32 7424
      %v299 = vshrl.u32 %v295, 16
      %v301 = vshll.u32 %v295, 16
      %v303 = vrot.slane %v301, 1
      %v304 = vor.u32 %v299, %v303
      %v306 = vshll.u32 %v296, 16
      %v308 = vrot.slane %v306, 1
      %v309 = vsel %vm297, %v304, %v308
      %v327 = vunpack.c.l.b16 %v273
      %v328 = vunpack.c.l.b16 %v274
      %v329 = vunpack.c.l.b16 %v275
      %v330 = vunpack.c.l.b16 %v276
      %v331 = vunpack.c.l.b16 %v277
      %v332 = vunpack.c.l.b16 %v278
      %v333 = vunpack.c.l.b16 %v279
      %v334 = vunpack.c.l.b16 %v280
      %v335 = vunpack.c.l.b16 %v281
      %v336 = vunpack.c.l.b16 %v282
      %v337 = vunpack.c.l.b16 %v283
      %v338 = vunpack.c.l.b16 %v284
      %v339 = vunpack.c.l.b16 %v285
      %v340 = vunpack.c.l.b16 %v286
      %v341 = vunpack.c.l.b16 %v287
      %v342 = vunpack.c.l.b16 %v288
      %v343 = vpack.c.b16 %v328, %v327
      %v344 = vpack.c.b16 %v330, %v329
      %v345 = vpack.c.b16 %v332, %v331
      %v346 = vpack.c.b16 %v334, %v333
      %v347 = vpack.c.b16 %v336, %v335
      %v348 = vpack.c.b16 %v338, %v337
      %v349 = vpack.c.b16 %v340, %v339
      %v350 = vpack.c.b16 %v342, %v341
      %359 = vmatpush.bf16.msra.mxu0 %v350
      %360 = vmatpush.bf16.msra.mxu0 %v349
      %361 = vmatpush.bf16.msra.mxu0 %v348
      %362 = vmatpush.bf16.msra.mxu0 %v347
      %363 = vmatpush.bf16.msra.mxu0 %v346
      %364 = vmatpush.bf16.msra.mxu0 %v345
      %365 = vmatpush.bf16.msra.mxu0 %v344
      %366 = vmatpush.bf16.msra.mxu0 %v343
      %367 = vmatmul.bf16.gmra.mxu0 %v309
      %v368 = vpop.f32.mrf.mxu0
      %v369 = vadd.f32 0.0, %v368
      %v370 = vpop.f32.mrf.mxu0
      %v371 = vadd.f32 0.0, %v370
      %372 = vdwg.mxu0
      %v390 = vunpack.c.l.b16 %v255
      %v391 = vunpack.c.l.b16 %v256
      %v392 = vunpack.c.l.b16 %v257
      %v393 = vunpack.c.l.b16 %v258
      %v394 = vunpack.c.l.b16 %v259
      %v395 = vunpack.c.l.b16 %v260
      %v396 = vunpack.c.l.b16 %v261
      %v397 = vunpack.c.l.b16 %v262
      %v398 = vunpack.c.l.b16 %v263
      %v399 = vunpack.c.l.b16 %v264
      %v400 = vunpack.c.l.b16 %v265
      %v401 = vunpack.c.l.b16 %v266
      %v402 = vunpack.c.l.b16 %v267
      %v403 = vunpack.c.l.b16 %v268
      %v404 = vunpack.c.l.b16 %v269
      %v405 = vunpack.c.l.b16 %v270
      %v406 = vpack.c.b16 %v391, %v390
      %v407 = vpack.c.b16 %v393, %v392
      %v408 = vpack.c.b16 %v395, %v394
      %v409 = vpack.c.b16 %v397, %v396
      %v410 = vpack.c.b16 %v399, %v398
      %v411 = vpack.c.b16 %v401, %v400
      %v412 = vpack.c.b16 %v403, %v402
      %v413 = vpack.c.b16 %v405, %v404
      %422 = vmatpush.bf16.msra.mxu0 %v413
      %423 = vmatpush.bf16.msra.mxu0 %v412
      %424 = vmatpush.bf16.msra.mxu0 %v411
      %425 = vmatpush.bf16.msra.mxu0 %v410
      %426 = vmatpush.bf16.msra.mxu0 %v409
      %427 = vmatpush.bf16.msra.mxu0 %v408
      %428 = vmatpush.bf16.msra.mxu0 %v407
      %429 = vmatpush.bf16.msra.mxu0 %v406
      %430 = vmatmul.bf16.gmra.mxu0 %v295
      %v431 = vpop.f32.mrf.mxu0
      %v432 = vadd.f32 %v369, %v431
      %v433 = vpop.f32.mrf.mxu0
      %v434 = vadd.f32 %v371, %v433
      %435 = vdwg.mxu0
      %v436 = vld [vmem:[%s246] sm:$0xe]
      %s437 = scalar_lea.vmem %s1, 128
      %v438 = vld [vmem:[%s437] sm:$0xf]
      %v439 = vld [vmem:[%s437 + $0x4] sm:$0xf]
      %v440 = vld [vmem:[%s437 + $0x8] sm:$0xf]
      %v441 = vld [vmem:[%s437 + $0xc] sm:$0xf]
      %v442 = vld [vmem:[%s437 + $0x10] sm:$0xf]
      %v443 = vld [vmem:[%s437 + $0x14] sm:$0xf]
      %v444 = vld [vmem:[%s437 + $0x18] sm:$0xf]
      %v445 = vld [vmem:[%s437 + $0x1c] sm:$0xf]
      %v446 = vld [vmem:[%s437 + $0x20] sm:$0xf]
      %v447 = vld [vmem:[%s437 + $0x24] sm:$0xf]
      %v448 = vld [vmem:[%s437 + $0x28] sm:$0xf]
      %v449 = vld [vmem:[%s437 + $0x2c] sm:$0xf]
      %v450 = vld [vmem:[%s437 + $0x30] sm:$0xf]
      %v451 = vld [vmem:[%s437 + $0x34] sm:$0xf]
      %v452 = vld [vmem:[%s437 + $0x38] sm:$0xf]
      %v453 = vld [vmem:[%s437 + $0x3c] sm:$0xf]
      %v455 = vunpack.c.l.b16 %v436
      %v456 = vpack.c.b16 %v293, %v455
      %vm457 = vcmask 1046528
      %v458 = vrot.slane %v456, 1
      %v459 = vrot.slane %v296, 1
      %v460 = vsel %vm457, %v458, %v459
      %v478 = vunpack.c.l.b16 %v438
      %v479 = vunpack.c.l.b16 %v439
      %v480 = vunpack.c.l.b16 %v440
      %v481 = vunpack.c.l.b16 %v441
      %v482 = vunpack.c.l.b16 %v442
      %v483 = vunpack.c.l.b16 %v443
      %v484 = vunpack.c.l.b16 %v444
      %v485 = vunpack.c.l.b16 %v445
      %v486 = vunpack.c.l.b16 %v446
      %v487 = vunpack.c.l.b16 %v447
      %v488 = vunpack.c.l.b16 %v448
      %v489 = vunpack.c.l.b16 %v449
      %v490 = vunpack.c.l.b16 %v450
      %v491 = vunpack.c.l.b16 %v451
      %v492 = vunpack.c.l.b16 %v452
      %v493 = vunpack.c.l.b16 %v453
      %v494 = vpack.c.b16 %v479, %v478
      %v495 = vpack.c.b16 %v481, %v480
      %v496 = vpack.c.b16 %v483, %v482
      %v497 = vpack.c.b16 %v485, %v484
      %v498 = vpack.c.b16 %v487, %v486
      %v499 = vpack.c.b16 %v489, %v488
      %v500 = vpack.c.b16 %v491, %v490
      %v501 = vpack.c.b16 %v493, %v492
      %510 = vmatpush.bf16.msra.mxu0 %v501
      %511 = vmatpush.bf16.msra.mxu0 %v500
      %512 = vmatpush.bf16.msra.mxu0 %v499
      %513 = vmatpush.bf16.msra.mxu0 %v498
      %514 = vmatpush.bf16.msra.mxu0 %v497
      %515 = vmatpush.bf16.msra.mxu0 %v496
      %516 = vmatpush.bf16.msra.mxu0 %v495
      %517 = vmatpush.bf16.msra.mxu0 %v494
      %518 = vmatmul.bf16.gmra.mxu0 %v460
      %v519 = vpop.f32.mrf.mxu0
      %v520 = vadd.f32 0.0, %v519
      %v521 = vpop.f32.mrf.mxu0
      %v522 = vadd.f32 0.0, %v521
      %523 = vdwg.mxu0
      %v524 = vadd.f32 %v432, %v520
      %v525 = vadd.f32 %v434, %v522
      %v526 = vld [vmem:[%s246 + $0x8] sm:$0x3]
      %s527 = scalar_lea.vmem %s1, 192
      %v528 = vld [vmem:[%s527] sm:$0xf]
      %v529 = vld [vmem:[%s527 + $0x4] sm:$0xf]
      %v530 = vld [vmem:[%s527 + $0x8] sm:$0xf]
      %v531 = vld [vmem:[%s527 + $0xc] sm:$0xf]
      %v532 = vld [vmem:[%s527 + $0x10] sm:$0xf]
      %v533 = vld [vmem:[%s527 + $0x14] sm:$0xf]
      %v534 = vld [vmem:[%s527 + $0x18] sm:$0xf]
      %v535 = vld [vmem:[%s527 + $0x1c] sm:$0xf]
      %v536 = vld [vmem:[%s527 + $0x20] sm:$0xf]
      %v537 = vld [vmem:[%s527 + $0x24] sm:$0xf]
      %v538 = vld [vmem:[%s527 + $0x28] sm:$0xf]
      %v539 = vld [vmem:[%s527 + $0x2c] sm:$0xf]
      %v540 = vld [vmem:[%s527 + $0x30] sm:$0xf]
      %v541 = vld [vmem:[%s527 + $0x34] sm:$0xf]
      %v542 = vld [vmem:[%s527 + $0x38] sm:$0xf]
      %v543 = vld [vmem:[%s527 + $0x3c] sm:$0xf]
      %v545 = vunpack.c.l.b16 %v526
      %v546 = vpack.c.b16 %v545, %v545
      %vm547 = vsmask.f32 6400
      %v549 = vshrl.u32 %v456, 16
      %v551 = vrot.slane %v549, 1
      %v552 = vshll.u32 %v456, 16
      %v554 = vrot.slane %v552, 2
      %v555 = vor.u32 %v551, %v554
      %v557 = vshrl.u32 %v546, 16
      %v559 = vrot.slane %v557, 1
      %v560 = vshll.u32 %v546, 16
      %v562 = vrot.slane %v560, 2
      %v563 = vor.u32 %v559, %v562
      %v564 = vsel %vm547, %v555, %v563
      %v582 = vunpack.c.l.b16 %v528
      %v583 = vunpack.c.l.b16 %v529
      %v584 = vunpack.c.l.b16 %v530
      %v585 = vunpack.c.l.b16 %v531
      %v586 = vunpack.c.l.b16 %v532
      %v587 = vunpack.c.l.b16 %v533
      %v588 = vunpack.c.l.b16 %v534
      %v589 = vunpack.c.l.b16 %v535
      %v590 = vunpack.c.l.b16 %v536
      %v591 = vunpack.c.l.b16 %v537
      %v592 = vunpack.c.l.b16 %v538
      %v593 = vunpack.c.l.b16 %v539
      %v594 = vunpack.c.l.b16 %v540
      %v595 = vunpack.c.l.b16 %v541
      %v596 = vunpack.c.l.b16 %v542
      %v597 = vunpack.c.l.b16 %v543
      %v598 = vpack.c.b16 %v583, %v582
      %v599 = vpack.c.b16 %v585, %v584
      %v600 = vpack.c.b16 %v587, %v586
      %v601 = vpack.c.b16 %v589, %v588
      %v602 = vpack.c.b16 %v591, %v590
      %v603 = vpack.c.b16 %v593, %v592
      %v604 = vpack.c.b16 %v595, %v594
      %v605 = vpack.c.b16 %v597, %v596
      %614 = vmatpush.bf16.msra.mxu0 %v605
      %615 = vmatpush.bf16.msra.mxu0 %v604
      %616 = vmatpush.bf16.msra.mxu0 %v603
      %617 = vmatpush.bf16.msra.mxu0 %v602
      %618 = vmatpush.bf16.msra.mxu0 %v601
      %619 = vmatpush.bf16.msra.mxu0 %v600
      %620 = vmatpush.bf16.msra.mxu0 %v599
      %621 = vmatpush.bf16.msra.mxu0 %v598
      %622 = vmatmul.bf16.gmra.mxu0 %v564
      %v623 = vpop.f32.mrf.mxu0
      %v624 = vadd.f32 0.0, %v623
      %v625 = vpop.f32.mrf.mxu0
      %v626 = vadd.f32 0.0, %v625
      %627 = vdwg.mxu0
      %v628 = vadd.f32 %v524, %v624
      %v629 = vadd.f32 %v525, %v626
      %v630 = vld [vmem:[%s246] sm:$0xc]
      %s631 = scalar_lea.vmem %s1, 256
      %v632 = vld [vmem:[%s631] sm:$0xf]
      %v633 = vld [vmem:[%s631 + $0x4] sm:$0xf]
      %v634 = vld [vmem:[%s631 + $0x8] sm:$0xf]
      %v635 = vld [vmem:[%s631 + $0xc] sm:$0xf]
      %v636 = vld [vmem:[%s631 + $0x10] sm:$0xf]
      %v637 = vld [vmem:[%s631 + $0x14] sm:$0xf]
      %v638 = vld [vmem:[%s631 + $0x18] sm:$0xf]
      %v639 = vld [vmem:[%s631 + $0x1c] sm:$0xf]
      %v640 = vld [vmem:[%s631 + $0x20] sm:$0xf]
      %v641 = vld [vmem:[%s631 + $0x24] sm:$0xf]
      %v642 = vld [vmem:[%s631 + $0x28] sm:$0xf]
      %v643 = vld [vmem:[%s631 + $0x2c] sm:$0xf]
      %v644 = vld [vmem:[%s631 + $0x30] sm:$0xf]
      %v645 = vld [vmem:[%s631 + $0x34] sm:$0xf]
      %v646 = vld [vmem:[%s631 + $0x38] sm:$0xf]
      %v647 = vld [vmem:[%s631 + $0x3c] sm:$0xf]
      %v649 = vunpack.c.l.b16 %v630
      %v650 = vpack.c.b16 %v293, %v649
      %vm651 = vcmask 1045504
      %v652 = vrot.slane %v650, 2
      %v653 = vrot.slane %v546, 2
      %v654 = vsel %vm651, %v652, %v653
      %v672 = vunpack.c.l.b16 %v632
      %v673 = vunpack.c.l.b16 %v633
      %v674 = vunpack.c.l.b16 %v634
      %v675 = vunpack.c.l.b16 %v635
      %v676 = vunpack.c.l.b16 %v636
      %v677 = vunpack.c.l.b16 %v637
      %v678 = vunpack.c.l.b16 %v638
      %v679 = vunpack.c.l.b16 %v639
      %v680 = vunpack.c.l.b16 %v640
      %v681 = vunpack.c.l.b16 %v641
      %v682 = vunpack.c.l.b16 %v642
      %v683 = vunpack.c.l.b16 %v643
      %v684 = vunpack.c.l.b16 %v644
      %v685 = vunpack.c.l.b16 %v645
      %v686 = vunpack.c.l.b16 %v646
      %v687 = vunpack.c.l.b16 %v647
      %v688 = vpack.c.b16 %v673, %v672
      %v689 = vpack.c.b16 %v675, %v674
      %v690 = vpack.c.b16 %v677, %v676
      %v691 = vpack.c.b16 %v679, %v678
      %v692 = vpack.c.b16 %v681, %v680
      %v693 = vpack.c.b16 %v683, %v682
      %v694 = vpack.c.b16 %v685, %v684
      %v695 = vpack.c.b16 %v687, %v686
      %704 = vmatpush.bf16.msra.mxu0 %v695
      %705 = vmatpush.bf16.msra.mxu0 %v694
      %706 = vmatpush.bf16.msra.mxu0 %v693
      %707 = vmatpush.bf16.msra.mxu0 %v692
      %708 = vmatpush.bf16.msra.mxu0 %v691
      %709 = vmatpush.bf16.msra.mxu0 %v690
      %710 = vmatpush.bf16.msra.mxu0 %v689
      %711 = vmatpush.bf16.msra.mxu0 %v688
      %712 = vmatmul.bf16.gmra.mxu0 %v654
      %v713 = vpop.f32.mrf.mxu0
      %v714 = vadd.f32 0.0, %v713
      %v715 = vpop.f32.mrf.mxu0
      %v716 = vadd.f32 0.0, %v715
      %717 = vdwg.mxu0
      %v718 = vadd.f32 %v628, %v714
      %v719 = vadd.f32 %v629, %v716
      %v720 = vld [vmem:[%s246 + $0x8] sm:$0x7]
      %s721 = scalar_lea.vmem %s1, 320
      %v722 = vld [vmem:[%s721] sm:$0xf]
      %v723 = vld [vmem:[%s721 + $0x4] sm:$0xf]
      %v724 = vld [vmem:[%s721 + $0x8] sm:$0xf]
      %v725 = vld [vmem:[%s721 + $0xc] sm:$0xf]
      %v726 = vld [vmem:[%s721 + $0x10] sm:$0xf]
      %v727 = vld [vmem:[%s721 + $0x14] sm:$0xf]
      %v728 = vld [vmem:[%s721 + $0x18] sm:$0xf]
      %v729 = vld [vmem:[%s721 + $0x1c] sm:$0xf]
      %v730 = vld [vmem:[%s721 + $0x20] sm:$0xf]
      %v731 = vld [vmem:[%s721 + $0x24] sm:$0xf]
      %v732 = vld [vmem:[%s721 + $0x28] sm:$0xf]
      %v733 = vld [vmem:[%s721 + $0x2c] sm:$0xf]
      %v734 = vld [vmem:[%s721 + $0x30] sm:$0xf]
      %v735 = vld [vmem:[%s721 + $0x34] sm:$0xf]
      %v736 = vld [vmem:[%s721 + $0x38] sm:$0xf]
      %v737 = vld [vmem:[%s721 + $0x3c] sm:$0xf]
      %v739 = vunpack.c.l.b16 %v720
      %v740 = vpack.c.b16 %v739, %v739
      %vm741 = vsmask.f32 5376
      %v743 = vshrl.u32 %v650, 16
      %v745 = vrot.slane %v743, 2
      %v746 = vshll.u32 %v650, 16
      %v748 = vrot.slane %v746, 3
      %v749 = vor.u32 %v745, %v748
      %v751 = vshrl.u32 %v740, 16
      %v753 = vrot.slane %v751, 2
      %v754 = vshll.u32 %v740, 16
      %v756 = vrot.slane %v754, 3
      %v757 = vor.u32 %v753, %v756
      %v758 = vsel %vm741, %v749, %v757
      %v776 = vunpack.c.l.b16 %v722
      %v777 = vunpack.c.l.b16 %v723
      %v778 = vunpack.c.l.b16 %v724
      %v779 = vunpack.c.l.b16 %v725
      %v780 = vunpack.c.l.b16 %v726
      %v781 = vunpack.c.l.b16 %v727
      %v782 = vunpack.c.l.b16 %v728
      %v783 = vunpack.c.l.b16 %v729
      %v784 = vunpack.c.l.b16 %v730
      %v785 = vunpack.c.l.b16 %v731
      %v786 = vunpack.c.l.b16 %v732
      %v787 = vunpack.c.l.b16 %v733
      %v788 = vunpack.c.l.b16 %v734
      %v789 = vunpack.c.l.b16 %v735
      %v790 = vunpack.c.l.b16 %v736
      %v791 = vunpack.c.l.b16 %v737
      %v792 = vpack.c.b16 %v777, %v776
      %v793 = vpack.c.b16 %v779, %v778
      %v794 = vpack.c.b16 %v781, %v780
      %v795 = vpack.c.b16 %v783, %v782
      %v796 = vpack.c.b16 %v785, %v784
      %v797 = vpack.c.b16 %v787, %v786
      %v798 = vpack.c.b16 %v789, %v788
      %v799 = vpack.c.b16 %v791, %v790
      %808 = vmatpush.bf16.msra.mxu0 %v799
      %809 = vmatpush.bf16.msra.mxu0 %v798
      %810 = vmatpush.bf16.msra.mxu0 %v797
      %811 = vmatpush.bf16.msra.mxu0 %v796
      %812 = vmatpush.bf16.msra.mxu0 %v795
      %813 = vmatpush.bf16.msra.mxu0 %v794
      %814 = vmatpush.bf16.msra.mxu0 %v793
      %815 = vmatpush.bf16.msra.mxu0 %v792
      %816 = vmatmul.bf16.gmra.mxu0 %v758
      %v817 = vpop.f32.mrf.mxu0
      %v818 = vadd.f32 0.0, %v817
      %v819 = vpop.f32.mrf.mxu0
      %v820 = vadd.f32 0.0, %v819
      %821 = vdwg.mxu0
      %v822 = vadd.f32 %v718, %v818
      %v823 = vadd.f32 %v719, %v820
      %v824 = vld [vmem:[%s246] sm:$0x8]
      %s825 = scalar_lea.vmem %s1, 384
      %v826 = vld [vmem:[%s825] sm:$0xf]
      %v827 = vld [vmem:[%s825 + $0x4] sm:$0xf]
      %v828 = vld [vmem:[%s825 + $0x8] sm:$0xf]
      %v829 = vld [vmem:[%s825 + $0xc] sm:$0xf]
      %v830 = vld [vmem:[%s825 + $0x10] sm:$0xf]
      %v831 = vld [vmem:[%s825 + $0x14] sm:$0xf]
      %v832 = vld [vmem:[%s825 + $0x18] sm:$0xf]
      %v833 = vld [vmem:[%s825 + $0x1c] sm:$0xf]
      %v834 = vld [vmem:[%s825 + $0x20] sm:$0xf]
      %v835 = vld [vmem:[%s825 + $0x24] sm:$0xf]
      %v836 = vld [vmem:[%s825 + $0x28] sm:$0xf]
      %v837 = vld [vmem:[%s825 + $0x2c] sm:$0xf]
      %v838 = vld [vmem:[%s825 + $0x30] sm:$0xf]
      %v839 = vld [vmem:[%s825 + $0x34] sm:$0xf]
      %v840 = vld [vmem:[%s825 + $0x38] sm:$0xf]
      %v841 = vld [vmem:[%s825 + $0x3c] sm:$0xf]
      %v843 = vunpack.c.l.b16 %v824
      %v844 = vpack.c.b16 %v293, %v843
      %vm845 = vcmask 1044480
      %v846 = vrot.slane %v844, 3
      %v847 = vrot.slane %v740, 3
      %v848 = vsel %vm845, %v846, %v847
      %v866 = vunpack.c.l.b16 %v826
      %v867 = vunpack.c.l.b16 %v827
      %v868 = vunpack.c.l.b16 %v828
      %v869 = vunpack.c.l.b16 %v829
      %v870 = vunpack.c.l.b16 %v830
      %v871 = vunpack.c.l.b16 %v831
      %v872 = vunpack.c.l.b16 %v832
      %v873 = vunpack.c.l.b16 %v833
      %v874 = vunpack.c.l.b16 %v834
      %v875 = vunpack.c.l.b16 %v835
      %v876 = vunpack.c.l.b16 %v836
      %v877 = vunpack.c.l.b16 %v837
      %v878 = vunpack.c.l.b16 %v838
      %v879 = vunpack.c.l.b16 %v839
      %v880 = vunpack.c.l.b16 %v840
      %v881 = vunpack.c.l.b16 %v841
      %v882 = vpack.c.b16 %v867, %v866
      %v883 = vpack.c.b16 %v869, %v868
      %v884 = vpack.c.b16 %v871, %v870
      %v885 = vpack.c.b16 %v873, %v872
      %v886 = vpack.c.b16 %v875, %v874
      %v887 = vpack.c.b16 %v877, %v876
      %v888 = vpack.c.b16 %v879, %v878
      %v889 = vpack.c.b16 %v881, %v880
      %898 = vmatpush.bf16.msra.mxu0 %v889
      %899 = vmatpush.bf16.msra.mxu0 %v888
      %900 = vmatpush.bf16.msra.mxu0 %v887
      %901 = vmatpush.bf16.msra.mxu0 %v886
      %902 = vmatpush.bf16.msra.mxu0 %v885
      %903 = vmatpush.bf16.msra.mxu0 %v884
      %904 = vmatpush.bf16.msra.mxu0 %v883
      %905 = vmatpush.bf16.msra.mxu0 %v882
      %906 = vmatmul.bf16.gmra.mxu0 %v848
      %v907 = vpop.f32.mrf.mxu0
      %v908 = vadd.f32 0.0, %v907
      %v909 = vpop.f32.mrf.mxu0
      %v910 = vadd.f32 0.0, %v909
      %911 = vdwg.mxu0
      %v912 = vadd.f32 %v822, %v908
      %v913 = vadd.f32 %v823, %v910
      %v914 = vperm.slane %v252, 0
      %v915 = vadd.f32 %v912, %v914
      %v916 = vadd.f32 %v913, %v914
      %vm917 = vcmp.gt.f32.partialorder %v915, 0.0
      %vm918 = vcmp.gt.f32.partialorder %v916, 0.0
      %v919 = vmul.f32 %v915, 0.01
      %v920 = vmul.f32 %v916, 0.01
      %v921 = vsel %vm917, %v915, %v919
      %v922 = vsel %vm918, %v916, %v920
      %v923 = vpack.c.bf16 %v922, %v921
      %v924 = vld [vmem:[%s2] sm:$0xf]
      %v925 = vld [vmem:[%s2 + $0x4] sm:$0xf]
      %v926 = vld [vmem:[%s2 + $0x8] sm:$0xf]
      %v927 = vld [vmem:[%s2 + $0xc] sm:$0xf]
      %v928 = vld [vmem:[%s2 + $0x10] sm:$0xf]
      %v929 = vld [vmem:[%s2 + $0x14] sm:$0xf]
      %v930 = vld [vmem:[%s2 + $0x18] sm:$0xf]
      %v931 = vld [vmem:[%s2 + $0x1c] sm:$0xf]
      %v932 = vld [vmem:[%s2 + $0x20] sm:$0xf]
      %v933 = vld [vmem:[%s2 + $0x24] sm:$0xf]
      %v934 = vld [vmem:[%s2 + $0x28] sm:$0xf]
      %v935 = vld [vmem:[%s2 + $0x2c] sm:$0xf]
      %v936 = vld [vmem:[%s2 + $0x30] sm:$0xf]
      %v937 = vld [vmem:[%s2 + $0x34] sm:$0xf]
      %v938 = vld [vmem:[%s2 + $0x38] sm:$0xf]
      %v939 = vld [vmem:[%s2 + $0x3c] sm:$0xf]
      %v940 = vperm.slane %v252, 1
      %v957 = vunpack.c.l.b16 %v924
      %v958 = vunpack.c.l.b16 %v925
      %v959 = vunpack.c.l.b16 %v926
      %v960 = vunpack.c.l.b16 %v927
      %v961 = vunpack.c.l.b16 %v928
      %v962 = vunpack.c.l.b16 %v929
      %v963 = vunpack.c.l.b16 %v930
      %v964 = vunpack.c.l.b16 %v931
      %v965 = vunpack.c.l.b16 %v932
      %v966 = vunpack.c.l.b16 %v933
      %v967 = vunpack.c.l.b16 %v934
      %v968 = vunpack.c.l.b16 %v935
      %v969 = vunpack.c.l.b16 %v936
      %v970 = vunpack.c.l.b16 %v937
      %v971 = vunpack.c.l.b16 %v938
      %v972 = vunpack.c.l.b16 %v939
      %v973 = vpack.c.b16 %v958, %v957
      %v974 = vpack.c.b16 %v960, %v959
      %v975 = vpack.c.b16 %v962, %v961
      %v976 = vpack.c.b16 %v964, %v963
      %v977 = vpack.c.b16 %v966, %v965
      %v978 = vpack.c.b16 %v968, %v967
      %v979 = vpack.c.b16 %v970, %v969
      %v980 = vpack.c.b16 %v972, %v971
      %989 = vmatpush.bf16.msra.mxu0 %v980
      %990 = vmatpush.bf16.msra.mxu0 %v979
      %991 = vmatpush.bf16.msra.mxu0 %v978
      %992 = vmatpush.bf16.msra.mxu0 %v977
      %993 = vmatpush.bf16.msra.mxu0 %v976
      %994 = vmatpush.bf16.msra.mxu0 %v975
      %995 = vmatpush.bf16.msra.mxu0 %v974
      %996 = vmatpush.bf16.msra.mxu0 %v973
      %997 = vmatmul.bf16.gmra.mxu0 %v923
      %v998 = vpop.f32.mrf.mxu0
      %v999 = vadd.f32 %v940, %v998
      %v1000 = vpop.f32.mrf.mxu0
      %v1001 = vadd.f32 %v940, %v1000
      %1002 = vdwg.mxu0
      %vm1003 = vcmp.gt.f32.partialorder %v999, 0.0
      %vm1004 = vcmp.gt.f32.partialorder %v1001, 0.0
      %v1005 = vmul.f32 %v999, 0.01
      %v1006 = vmul.f32 %v1001, 0.01
      %v1007 = vsel %vm1003, %v999, %v1005
      %v1008 = vsel %vm1004, %v1001, %v1006
      %v1009 = vpack.c.bf16 %v1008, %v1007
      %v1010 = vld [vmem:[%s3] sm:$0xf]
      %v1011 = vld [vmem:[%s3 + $0x4] sm:$0xf]
      %v1012 = vld [vmem:[%s3 + $0x8] sm:$0xf]
      %v1013 = vld [vmem:[%s3 + $0xc] sm:$0xf]
      %v1014 = vld [vmem:[%s3 + $0x10] sm:$0xf]
      %v1015 = vld [vmem:[%s3 + $0x14] sm:$0xf]
      %v1016 = vld [vmem:[%s3 + $0x18] sm:$0xf]
      %v1017 = vld [vmem:[%s3 + $0x1c] sm:$0xf]
      %v1018 = vld [vmem:[%s3 + $0x20] sm:$0xf]
      %v1019 = vld [vmem:[%s3 + $0x24] sm:$0xf]
      %v1020 = vld [vmem:[%s3 + $0x28] sm:$0xf]
      %v1021 = vld [vmem:[%s3 + $0x2c] sm:$0xf]
      %v1022 = vld [vmem:[%s3 + $0x30] sm:$0xf]
      %v1023 = vld [vmem:[%s3 + $0x34] sm:$0xf]
      %v1024 = vld [vmem:[%s3 + $0x38] sm:$0xf]
      %v1025 = vld [vmem:[%s3 + $0x3c] sm:$0xf]
      %v1026 = vperm.slane %v252, 2
      %v1043 = vunpack.c.l.b16 %v1010
      %v1044 = vunpack.c.l.b16 %v1011
      %v1045 = vunpack.c.l.b16 %v1012
      %v1046 = vunpack.c.l.b16 %v1013
      %v1047 = vunpack.c.l.b16 %v1014
      %v1048 = vunpack.c.l.b16 %v1015
      %v1049 = vunpack.c.l.b16 %v1016
      %v1050 = vunpack.c.l.b16 %v1017
      %v1051 = vunpack.c.l.b16 %v1018
      %v1052 = vunpack.c.l.b16 %v1019
      %v1053 = vunpack.c.l.b16 %v1020
      %v1054 = vunpack.c.l.b16 %v1021
      %v1055 = vunpack.c.l.b16 %v1022
      %v1056 = vunpack.c.l.b16 %v1023
      %v1057 = vunpack.c.l.b16 %v1024
      %v1058 = vunpack.c.l.b16 %v1025
      %v1059 = vpack.c.b16 %v1044, %v1043
      %v1060 = vpack.c.b16 %v1046, %v1045
      %v1061 = vpack.c.b16 %v1048, %v1047
      %v1062 = vpack.c.b16 %v1050, %v1049
      %v1063 = vpack.c.b16 %v1052, %v1051
      %v1064 = vpack.c.b16 %v1054, %v1053
      %v1065 = vpack.c.b16 %v1056, %v1055
      %v1066 = vpack.c.b16 %v1058, %v1057
      %1075 = vmatpush.bf16.msra.mxu0 %v1066
      %1076 = vmatpush.bf16.msra.mxu0 %v1065
      %1077 = vmatpush.bf16.msra.mxu0 %v1064
      %1078 = vmatpush.bf16.msra.mxu0 %v1063
      %1079 = vmatpush.bf16.msra.mxu0 %v1062
      %1080 = vmatpush.bf16.msra.mxu0 %v1061
      %1081 = vmatpush.bf16.msra.mxu0 %v1060
      %1082 = vmatpush.bf16.msra.mxu0 %v1059
      %1083 = vmatmul.bf16.gmra.mxu0 %v1009
      %v1084 = vpop.f32.mrf.mxu0
      %v1085 = vadd.f32 %v1026, %v1084
      %v1086 = vpop.f32.mrf.mxu0
      %v1087 = vadd.f32 %v1026, %v1086
      %1088 = vdwg.mxu0
      %vm1089 = vcmp.gt.f32.partialorder %v1085, 0.0
      %vm1090 = vcmp.gt.f32.partialorder %v1087, 0.0
      %v1091 = vmul.f32 %v1085, 0.01
      %v1092 = vmul.f32 %v1087, 0.01
      %v1093 = vsel %vm1089, %v1085, %v1091
      %v1094 = vsel %vm1090, %v1087, %v1092
      %v1095 = vpack.c.bf16 %v1094, %v1093
      %v1096 = vld [vmem:[%s4] sm:$0xf]
      %v1097 = vld [vmem:[%s4 + $0x4] sm:$0xf]
      %v1098 = vld [vmem:[%s4 + $0x8] sm:$0xf]
      %v1099 = vld [vmem:[%s4 + $0xc] sm:$0xf]
      %v1100 = vld [vmem:[%s4 + $0x10] sm:$0xf]
      %v1101 = vld [vmem:[%s4 + $0x14] sm:$0xf]
      %v1102 = vld [vmem:[%s4 + $0x18] sm:$0xf]
      %v1103 = vld [vmem:[%s4 + $0x1c] sm:$0xf]
      %v1104 = vld [vmem:[%s4 + $0x20] sm:$0xf]
      %v1105 = vld [vmem:[%s4 + $0x24] sm:$0xf]
      %v1106 = vld [vmem:[%s4 + $0x28] sm:$0xf]
      %v1107 = vld [vmem:[%s4 + $0x2c] sm:$0xf]
      %v1108 = vld [vmem:[%s4 + $0x30] sm:$0xf]
      %v1109 = vld [vmem:[%s4 + $0x34] sm:$0xf]
      %v1110 = vld [vmem:[%s4 + $0x38] sm:$0xf]
      %v1111 = vld [vmem:[%s4 + $0x3c] sm:$0xf]
      %v1112 = vperm.slane %v252, 3
      %v1129 = vunpack.c.l.b16 %v1096
      %v1130 = vunpack.c.l.b16 %v1097
      %v1131 = vunpack.c.l.b16 %v1098
      %v1132 = vunpack.c.l.b16 %v1099
      %v1133 = vunpack.c.l.b16 %v1100
      %v1134 = vunpack.c.l.b16 %v1101
      %v1135 = vunpack.c.l.b16 %v1102
      %v1136 = vunpack.c.l.b16 %v1103
      %v1137 = vunpack.c.l.b16 %v1104
      %v1138 = vunpack.c.l.b16 %v1105
      %v1139 = vunpack.c.l.b16 %v1106
      %v1140 = vunpack.c.l.b16 %v1107
      %v1141 = vunpack.c.l.b16 %v1108
      %v1142 = vunpack.c.l.b16 %v1109
      %v1143 = vunpack.c.l.b16 %v1110
      %v1144 = vunpack.c.l.b16 %v1111
      %v1145 = vpack.c.b16 %v1130, %v1129
      %v1146 = vpack.c.b16 %v1132, %v1131
      %v1147 = vpack.c.b16 %v1134, %v1133
      %v1148 = vpack.c.b16 %v1136, %v1135
      %v1149 = vpack.c.b16 %v1138, %v1137
      %v1150 = vpack.c.b16 %v1140, %v1139
      %v1151 = vpack.c.b16 %v1142, %v1141
      %v1152 = vpack.c.b16 %v1144, %v1143
      %1161 = vmatpush.bf16.msra.mxu0 %v1152
      %1162 = vmatpush.bf16.msra.mxu0 %v1151
      %1163 = vmatpush.bf16.msra.mxu0 %v1150
      %1164 = vmatpush.bf16.msra.mxu0 %v1149
      %1165 = vmatpush.bf16.msra.mxu0 %v1148
      %1166 = vmatpush.bf16.msra.mxu0 %v1147
      %1167 = vmatpush.bf16.msra.mxu0 %v1146
      %1168 = vmatpush.bf16.msra.mxu0 %v1145
      %1169 = vmatmul.bf16.gmra.mxu0 %v1095
      %v1170 = vpop.f32.mrf.mxu0
      %v1171 = vadd.f32 %v1112, %v1170
      %v1172 = vpop.f32.mrf.mxu0
      %v1173 = vadd.f32 %v1112, %v1172
      %1174 = vdwg.mxu0
      %v1175 = vpack.c.bf16 %v1171, %v1171
      %v1176 = vpack.c.bf16 %v1173, %v1173
      %1177 = vst [vmem:[%s251] sm:$0xf] %v1175
      %1178 = vst [vmem:[%s251 + $0x4] sm:$0xf] %v1176
      %p1179 = scmp.lt.s32.totalorder %s17, 1
      %s1180 = scalar_select %p1179, %s17, 1
      %s1181 = smul.addr %s1180, 2
      %s1182 = smul.addr %s1181, 4
      %s1183 = scalar_lea.vmem %s6, %s1182
      // Predicated region
      $region45: #{minimal_cnn_forward.1} parent=43 // pred_check
        %p1184 = pneg %p166
      $region46: #{minimal_cnn_forward.1} parent=43 // pred_check_branch
        %1186 = sbr.rel (%p1184) target = $region48
      $region47: #{minimal_cnn_forward.1} parent=43 // pred_region
        _
      $region48: #{minimal_cnn_forward.1} parent=43 // pred_fallthru
        _
    $region44: #{minimal_cnn_forward.1} parent=5 // pred_fallthru
      _
    %p1187 = scmp.le.s32.totalorder 2, %s12
    // Predicated region
    $region49: #{minimal_cnn_forward.1} parent=5 // pred_check
      %p1188 = pneg %p1187
    $region50: #{minimal_cnn_forward.1} parent=5 // pred_check_branch
      %1190 = sbr.rel (%p1188) target = $region52
    $region51: #{minimal_cnn_forward.1} parent=5 // pred_region
      %s1191 = ssub.s32 %s12, 2
      // Predicated region
      $region53: #{minimal_cnn_forward.1} parent=51 // pred_check
        %p1192 = pneg %p172
      $region54: #{minimal_cnn_forward.1} parent=51 // pred_check_branch
        %1194 = sbr.rel (%p1192) target = $region56
      $region55: #{minimal_cnn_forward.1} parent=51 // pred_region
        %p1195 = scmp.lt.s32.totalorder %s18, 1
        %s1196 = scalar_select %p1195, %s18, 1
        %s1197 = smul.addr %s1196, 2
        %s1198 = smul.addr %s1197, 4
        %s1199 = scalar_lea.vmem %s6, %s1198
      $region56: #{minimal_cnn_forward.1} parent=51 // pred_fallthru
        _
    $region52: #{minimal_cnn_forward.1} parent=5 // pred_fallthru
      _
  $region6: #{minimal_cnn_forward.1} parent=0 // loop_footer
    %s16 = sadd.s32 1, %s12
  $region7: #{minimal_cnn_forward.1} parent=0 // loop_footer_branch
    %11 = sbr.rel target = $region3
  $region8: #{minimal_cnn_forward.1} parent=0 // loop_exit
    _

</llo_original>
